<compile_context>
chip_gen: v7x
topology: tpu7x:2x2x1
jax: 0.10.0
libtpu: 0.0.40
codegen_flags: <defaults>
</compile_context>

<pallas_src>
import jax
import jax.numpy as jnp
from jax.experimental import pallas as pl
from jax.experimental.pallas import tpu as pltpu


def _attention_kernel(enc_ref, ve_ref, hs_ref, ctx_ref):
    # enc_ref: (Bt, S, H)   encoder outputs tile
    # ve_ref : (1, 1, H)    folded per-feature score vector
    # hs_ref : (Bt, 1, 1)   per-batch score constant (hidden-state term + bias)
    # ctx_ref: (Bt, H)      context output (lane-dense slab)
    enc = enc_ref[...]
    ve = ve_ref[...]
    hs = hs_ref[...]

    # scores[b, s] = sum_h enc[b, s, h] * v_e[h] + hidden_term[b]
    scores = jnp.sum(enc * ve, axis=-1, keepdims=True) + hs        # (Bt, S, 1)

    # softmax over the sequence axis (numerically stabilized)
    m = jnp.max(scores, axis=1, keepdims=True)                     # (Bt, 1, 1)
    e = jnp.exp(scores - m)                                        # (Bt, S, 1)
    denom = jnp.sum(e, axis=1)                                     # (Bt, 1)

    # unnormalized context via VPU multiply + sublane reduce (no M=1 matmul),
    # then one normalization multiply on the (Bt, H) result.
    ctx_un = jnp.sum(e * enc, axis=1)                              # (Bt, H)
    ctx = ctx_un * pl.reciprocal(denom, approx=True)               # (Bt, H)
    ctx_ref[...] = ctx.astype(ctx_ref.dtype)


def attention_forward(hidden_state, encoder_outputs, params, *, block_b=None):
    """hidden_state: (B, H), encoder_outputs: (B, S, H) -> context (B, H)."""
    B, S, H = encoder_outputs.shape
    (w1, b1), (w2, b2), (w3, b3), (w4, b4), w_out = params

    # ---- Fold the affine chain dense1..dense4 + to_weight (wrapper-side) ----
    # PyTorch Linear: y = x @ W.T + b, W is (out, in).
    c4 = w_out.reshape(H, 1)           # to_weight^T          (H, 1)
    c3 = w4.T @ c4                     # W4^T @ c4            (H, 1)
    c2 = w3.T @ c3                     # W3^T @ c3            (H, 1)
    c1 = w2.T @ c2                     # W2^T @ c2            (H, 1)
    w1t = w1.T                         # (2H, H)
    v_e = (w1t[:H] @ c1).reshape(1, 1, H)        # applied to encoder_outputs
    v_h = w1t[H:] @ c1                           # (H, 1), applied to hidden
    bias = b1 @ c1 + b2 @ c2 + b3 @ c3 + b4 @ c4  # (1,)

    # Per-batch additive score term (constant over seq) -- one batched GEMV.
    hscore = (hidden_state @ v_h + bias).reshape(B, 1, 1).astype(jnp.float32)

    enc = encoder_outputs.astype(jnp.float32)

    # ---- Batch tiling: Bt rows per grid step, enc tile capped at ~4 MiB ----
    if block_b is None:
        row_bytes = S * H * 4
        block_b = max(1, min(B, (4 * 1024 * 1024) // max(row_bytes, 1)))
    if block_b < B:
        block_b = max(8, (block_b // 8) * 8)     # keep sublane-friendly tiles
    nblk = -(-B // block_b)
    Bp = nblk * block_b
    if Bp != B:
        enc = jnp.pad(enc, ((0, Bp - B), (0, 0), (0, 0)))
        hscore = jnp.pad(hscore, ((0, Bp - B), (0, 0), (0, 0)))

    out = pl.pallas_call(
        _attention_kernel,
        out_shape=jax.ShapeDtypeStruct((Bp, H), jnp.float32),
        grid_spec=pltpu.PrefetchScalarGridSpec(
            num_scalar_prefetch=0,
            grid=(nblk,),
            in_specs=[
                pl.BlockSpec((block_b, S, H), lambda i: (i, 0, 0)),  # enc
                pl.BlockSpec((1, 1, H), lambda i: (0, 0, 0)),        # v_e
                pl.BlockSpec((block_b, 1, 1), lambda i: (i, 0, 0)),  # hid term
            ],
            out_specs=pl.BlockSpec((block_b, H), lambda i: (i, 0)),
        ),
        compiler_params=pltpu.CompilerParams(
            dimension_semantics=("parallel",)),
    )(enc, v_e.astype(jnp.float32), hscore)
    return out[:B]


def init_params(key, hidden_size):
    """Deterministic init mirroring nn.Linear shapes (weight: (out, in))."""
    ks = jax.random.split(key, 9)

    def linear(kw, kb, out_f, in_f):
        bound = 1.0 / jnp.sqrt(in_f)
        w = jax.random.uniform(kw, (out_f, in_f), jnp.float32, -bound, bound)
        b = jax.random.uniform(kb, (out_f,), jnp.float32, -bound, bound)
        return w, b

    H = hidden_size
    p1 = linear(ks[0], ks[1], H, 2 * H)   # dense1
    p2 = linear(ks[2], ks[3], H, H)       # dense2
    p3 = linear(ks[4], ks[5], H, H)       # dense3
    p4 = linear(ks[6], ks[7], H, H)       # dense4
    bound = 1.0 / jnp.sqrt(H)
    w_out = jax.random.uniform(ks[8], (1, H), jnp.float32, -bound, bound)
    return (p1, p2, p3, p4, w_out)


def attention_reference(hidden_state, encoder_outputs, params):
    """Pure-JAX reference matching the PyTorch forward layer-by-layer."""
    B, S, H = encoder_outputs.shape
    (w1, b1), (w2, b2), (w3, b3), (w4, b4), w_out = params
    hid = jnp.broadcast_to(hidden_state.reshape(B, 1, H), (B, S, H))
    x = jnp.concatenate([encoder_outputs, hid], axis=2).reshape(-1, 2 * H)
    x = x @ w1.T + b1
    x = x @ w2.T + b2
    x = x @ w3.T + b3
    x = x @ w4.T + b4
    scores = (x @ w_out.T).reshape(B, S)
    attn = jax.nn.softmax(scores, axis=1)
    ctx = jnp.einsum("bs,bsh->bh", attn, encoder_outputs)
    return ctx


if __name__ == "__main__":
    B, S, H = 2, 8, 32
    key = jax.random.PRNGKey(0)
    k_enc, k_hid, k_par = jax.random.split(key, 3)

    encoder_outputs = jax.random.normal(k_enc, (B, S, H), jnp.float32)
    hidden_state = jax.random.normal(k_hid, (B, H), jnp.float32)
    params = init_params(k_par, H)

    ctx = attention_forward(hidden_state, encoder_outputs, params)
    ctx = jax.block_until_ready(ctx)

    ref = attention_reference(hidden_state, encoder_outputs, params)
    assert ctx.shape == (B, H)
    # Folded affine chain + approx reciprocal reassociate fp32 rounding
    # (~1e-4 relative), hence the slightly looser tolerance.
    assert jnp.allclose(ctx, ref, atol=1e-3, rtol=1e-3)

    print("KERNEL_OK")
</pallas_src>

<mosaic_0001>
module attributes {stable_mosaic.version = 11 : i64} {
  func.func @_attention_kernel(%arg0: i32, %arg1: memref<2x8x32xf32, #tpu.memory_space<vmem>>, %arg2: memref<1x1x32xf32, #tpu.memory_space<vmem>>, %arg3: memref<2x1x1xf32, #tpu.memory_space<vmem>>, %arg4: memref<2x32xf32, #tpu.memory_space<vmem>>) attributes {dimension_semantics = [#tpu.dimension_semantics<parallel>], iteration_bounds = array<i64: 1>, scalar_prefetch = 0 : i64, scratch_operands = 0 : i64, tpu.core_type = #tpu.core_type<tc>, window_params = [{transform_indices = @transform_0, window_bounds = array<i64: 2, 8, 32>}, {pipeline_mode = #tpu.pipeline_mode<synchronous>, transform_indices = @transform_1, window_bounds = array<i64: 1, 1, 32>}, {transform_indices = @transform_2, window_bounds = array<i64: 2, 1, 1>}, {transform_indices = @transform_3, window_bounds = array<i64: 2, 32>}]} {
    %c0 = arith.constant 0 : index
    %c0_0 = arith.constant 0 : index
    %c0_1 = arith.constant 0 : index
    %0 = vector.load %arg1[%c0, %c0_0, %c0_1] : memref<2x8x32xf32, #tpu.memory_space<vmem>>, vector<2x8x32xf32>
    %c0_2 = arith.constant 0 : index
    %c0_3 = arith.constant 0 : index
    %c0_4 = arith.constant 0 : index
    %1 = vector.load %arg2[%c0_2, %c0_3, %c0_4] : memref<1x1x32xf32, #tpu.memory_space<vmem>>, vector<1x1x32xf32>
    %c0_5 = arith.constant 0 : index
    %c0_6 = arith.constant 0 : index
    %c0_7 = arith.constant 0 : index
    %2 = vector.load %arg3[%c0_5, %c0_6, %c0_7] : memref<2x1x1xf32, #tpu.memory_space<vmem>>, vector<2x1x1xf32>
    %3 = vector.broadcast %1 : vector<1x1x32xf32> to vector<2x8x32xf32>
    %4 = arith.mulf %0, %3 : vector<2x8x32xf32>
    %cst = arith.constant dense<0.000000e+00> : vector<2x8xf32>
    %5 = vector.multi_reduction <add>, %4, %cst [2] : vector<2x8x32xf32> to vector<2x8xf32>
    %6 = vector.shape_cast %5 : vector<2x8xf32> to vector<2x8x1xf32>
    %7 = vector.broadcast %2 : vector<2x1x1xf32> to vector<2x8x1xf32>
    %8 = arith.addf %6, %7 : vector<2x8x1xf32>
    %cst_8 = arith.constant dense<0xFF800000> : vector<2x1xf32>
    %9 = vector.multi_reduction <maximumf>, %8, %cst_8 [1] : vector<2x8x1xf32> to vector<2x1xf32>
    %10 = vector.shape_cast %9 : vector<2x1xf32> to vector<2x1x1xf32>
    %11 = vector.broadcast %10 : vector<2x1x1xf32> to vector<2x8x1xf32>
    %12 = arith.subf %8, %11 : vector<2x8x1xf32>
    %13 = math.exp %12 : vector<2x8x1xf32>
    %cst_9 = arith.constant dense<0.000000e+00> : vector<2x1xf32>
    %14 = vector.multi_reduction <add>, %13, %cst_9 [1] : vector<2x8x1xf32> to vector<2x1xf32>
    %15 = vector.broadcast %13 : vector<2x8x1xf32> to vector<2x8x32xf32>
    %16 = arith.mulf %15, %0 : vector<2x8x32xf32>
    %cst_10 = arith.constant dense<0.000000e+00> : vector<2x32xf32>
    %17 = vector.multi_reduction <add>, %16, %cst_10 [1] : vector<2x8x32xf32> to vector<2x32xf32>
    %18 = tpu.reciprocal %14 {approx = true} : vector<2x1xf32> -> vector<2x1xf32>
    %19 = vector.broadcast %18 : vector<2x1xf32> to vector<2x32xf32>
    %20 = arith.mulf %17, %19 : vector<2x32xf32>
    %c0_11 = arith.constant 0 : index
    %c0_12 = arith.constant 0 : index
    %21 = vector.load %arg4[%c0_11, %c0_12] : memref<2x32xf32, #tpu.memory_space<vmem>>, vector<2x32xf32>
    tpu.vector_store %arg4[%c0_11, %c0_12], %20 {strides = array<i32>} : memref<2x32xf32, #tpu.memory_space<vmem>>, vector<2x32xf32>,
    return
  }
  func.func @transform_0(%arg0: i32) -> (i32, i32, i32) {
    %c0_i32 = arith.constant 0 : i32
    %c0_i32_0 = arith.constant 0 : i32
    %c0_i32_1 = arith.constant 0 : i32
    return %arg0, %c0_i32, %c0_i32_0 : i32, i32, i32
  }
  func.func @transform_1(%arg0: i32) -> (i32, i32, i32) {
    %c0_i32 = arith.constant 0 : i32
    %c0_i32_0 = arith.constant 0 : i32
    %c0_i32_1 = arith.constant 0 : i32
    %c0_i32_2 = arith.constant 0 : i32
    return %c0_i32, %c0_i32_0, %c0_i32_1 : i32, i32, i32
  }
  func.func @transform_2(%arg0: i32) -> (i32, i32, i32) {
    %c0_i32 = arith.constant 0 : i32
    %c0_i32_0 = arith.constant 0 : i32
    %c0_i32_1 = arith.constant 0 : i32
    return %arg0, %c0_i32, %c0_i32_0 : i32, i32, i32
  }
  func.func @transform_3(%arg0: i32) -> (i32, i32) {
    %c0_i32 = arith.constant 0 : i32
    %c0_i32_0 = arith.constant 0 : i32
    return %arg0, %c0_i32 : i32, i32
  }
}

</mosaic_0001>

<llo_original>
// kernel: tpu_custom_call.1
$region0: #{tpu_custom_call.1}
  #allocation0 [shape = 'u32[]', space=smem, size = 0x4, offset = 0x4, fixed_abs, tag = 'smem constant byte address 0x4 - core index']
  #allocation1 [shape = 'u32[144,128]{1,0:T(1,128)}', space=vmem, size = 0x12000, scoped, tag = 'internal scratch']
  %s0 = inlined_call_operand.hbm [shape: f32[2,8,32], index: 0, kind: input, shape index: {}]
  %s1 = inlined_call_operand.vmem [shape: f32[1,1,32], index: 1, kind: input, shape index: {}]
  %s2 = inlined_call_operand.vmem [shape: f32[2,1,1], index: 2, kind: input, shape index: {}]
  %s3 = inlined_call_operand.hbm [shape: f32[2,32], index: 3, kind: output, shape index: {}]
  %s4 = sld [smem:[#allocation0]]
  $region26: #{tpu_custom_call.1} parent=0
    _
  %s6 = ssub.s32 1, %s4
  %s7 = scalar_select 0, %s6, %s4
  $region1: #{tpu_custom_call.1} parent=0
    #allocation2 [shape = 'u8[8192]{0}', space=vmem, size = 0x2000, scoped, tag = 'input window, operand 0, single buffered']
    #allocation3 [shape = 's32[1]{0}', space=sflag, size = 0x4, scoped, tag = 'scoped memory for tpu_custom_call.1']
    #allocation4 [shape = 's32[1]{0}', space=sflag, size = 0x4, scoped, tag = 'scoped memory for tpu_custom_call.1']
    #allocation5 [shape = 'u8[1024]{0}', space=vmem, size = 0x400, scoped, tag = 'output window, operand 0, single buffered']
    %8 = vsyncpa [#allocation3], 0
    %9 = vsyncpa [#allocation4], 0
    // Predicated region
    $region2: #{tpu_custom_call.1} parent=1 // pred_check
      _
    $region3: #{tpu_custom_call.1} parent=1 // pred_check_branch
      %11 = sbr.rel (0) target = $region5
    $region4: #{tpu_custom_call.1} parent=1 // pred_region
      %s13 = ssub.s32 256, 256
      %14 = vsyncadd [#allocation3], %s13
      %s15 = sshll.u32 [#allocation2], 4
      %s16 = int_to_ptr.vmem [resolvable:$true] %s15
      %21 = dma.hbm_to_vmem [thread:$0]  %s0, 256, %s16, [#allocation3], 128, 128, 8
    $region5: #{tpu_custom_call.1} parent=1 // pred_fallthru
      _
    // Predicated region
    $region6: #{tpu_custom_call.1} parent=1 // pred_check
      _
    $region7: #{tpu_custom_call.1} parent=1 // pred_check_branch
      %23 = sbr.rel (0) target = $region9
    $region8: #{tpu_custom_call.1} parent=1 // pred_region
      _
    $region9: #{tpu_custom_call.1} parent=1 // pred_fallthru
      _
    // Predicated region
    $region10: #{tpu_custom_call.1} parent=1 // pred_check
      _
    $region11: #{tpu_custom_call.1} parent=1 // pred_check_branch
      %25 = sbr.rel (0) target = $region13
    $region12: #{tpu_custom_call.1} parent=1 // pred_region
      _
    $region13: #{tpu_custom_call.1} parent=1 // pred_fallthru
      _
    // Predicated region
    $region14: #{tpu_custom_call.1} parent=1 // pred_check
      _
    $region15: #{tpu_custom_call.1} parent=1 // pred_check_branch
      %27 = sbr.rel (0) target = $region17
    $region16: #{tpu_custom_call.1} parent=1 // pred_region
      %28 = dma.done [#allocation3], 256
    $region17: #{tpu_custom_call.1} parent=1 // pred_fallthru
      _
    %v29 = vld [vmem:[#allocation2] sm:$0xff]
    %v30 = vld [vmem:[#allocation2 + $0x8] sm:$0xff]
    %v31 = vld [vmem:[%s1] sm:$0x1]
    %v32 = vld [vmem:[%s2] sm:$0x1]
    %v33 = vld [vmem:[%s2 + $0x1] sm:$0x1]
    %v35 = vlaneseq
    %v36 = vshrl.u32 %v35, 7
    %v37 = vsub.s32 0, %v36
    %v38 = vrot.slane %v31, %v37
    %v40 = vmul.f32 %v29, %v38
    %v41 = vmul.f32 %v30, %v38
    %vm42 = vcmask 261120
    %v43 = vsel %vm42, %v40, 0.0
    %44 = vadd.xlane.f32.xlu0 %v43
    %v45 = vpop.xlane.xlu0 %44
    %v46 = vsel %vm42, %v41, 0.0
    %47 = vadd.xlane.f32.xlu0 %v46
    %v48 = vpop.xlane.xlu0 %47
    %v51 = vlaneseq
    %v52 = vshrl.u32 %v51, 7
    %v53 = vsub.s32 0, %v52
    %v54 = vrot.slane %v32, %v53
    %v55 = vlaneseq
    %v56 = vshrl.u32 %v55, 7
    %v57 = vsub.s32 0, %v56
    %v58 = vrot.slane %v33, %v57
    %v61 = vadd.f32 %v45, %v54
    %v62 = vadd.f32 %v48, %v58
    %vm63 = vcmask 7168
    %v64 = vsel %vm63, %v61, -inf
    %v65 = vrot.slane %v64, 4
    %v66 = vmax.f32 %v64, %v65
    %v67 = vrot.slane %v66, 2
    %v68 = vmax.f32 %v66, %v67
    %v69 = vrot.slane %v68, 1
    %v70 = vmax.f32 %v68, %v69
    %v71 = vsel %vm63, %v62, -inf
    %v72 = vrot.slane %v71, 4
    %v73 = vmax.f32 %v71, %v72
    %v74 = vrot.slane %v73, 2
    %v75 = vmax.f32 %v73, %v74
    %v76 = vrot.slane %v75, 1
    %v77 = vmax.f32 %v75, %v76
    %v78 = vsub.f32 %v61, %v70
    %v79 = vsub.f32 %v62, %v77
    %v80 = vmul.f32 %v78, 1.442695
    %v81 = vpow.pop %v80
    %v82 = vmul.f32 %v79, 1.442695
    %v83 = vpow.pop %v82
    %v84 = vsel %vm63, %v81, 0.0
    %v85 = vrot.slane %v84, 4
    %v86 = vadd.f32 %v84, %v85
    %v87 = vrot.slane %v86, 2
    %v88 = vadd.f32 %v86, %v87
    %v89 = vrot.slane %v88, 1
    %v90 = vadd.f32 %v88, %v89
    %v91 = vsel %vm63, %v83, 0.0
    %v92 = vrot.slane %v91, 4
    %v93 = vadd.f32 %v91, %v92
    %v94 = vrot.slane %v93, 2
    %v95 = vadd.f32 %v93, %v94
    %v96 = vrot.slane %v95, 1
    %v97 = vadd.f32 %v95, %v96
    %99 = vset.pattern.permute.xlu0 0
    %100 = vperm.xlu0 %99, %v81
    %v101 = vpop.permute.xlu0 %100
    %104 = vset.pattern.permute.xlu0 0
    %105 = vperm.xlu0 %104, %v83
    %v106 = vpop.permute.xlu0 %105
    %v108 = vmul.f32 %v101, %v29
    %v109 = vmul.f32 %v106, %v30
    %v110 = vsel %vm42, %v108, 0.0
    %v111 = vrot.slane %v110, 4
    %v112 = vadd.f32 %v110, %v111
    %v113 = vrot.slane %v112, 2
    %v114 = vadd.f32 %v112, %v113
    %v115 = vrot.slane %v114, 1
    %v116 = vadd.f32 %v114, %v115
    %v117 = vsel %vm42, %v109, 0.0
    %v118 = vrot.slane %v117, 4
    %v119 = vadd.f32 %v117, %v118
    %v120 = vrot.slane %v119, 2
    %v121 = vadd.f32 %v119, %v120
    %v122 = vrot.slane %v121, 1
    %v123 = vadd.f32 %v121, %v122
    %v124 = vrcp.pop %v90
    %v125 = vrcp.pop %v97
    %127 = vset.pattern.permute.xlu0 0
    %128 = vperm.xlu0 %127, %v124
    %v129 = vpop.permute.xlu0 %128
    %132 = vset.pattern.permute.xlu0 0
    %133 = vperm.xlu0 %132, %v125
    %v134 = vpop.permute.xlu0 %133
    %v136 = vmul.f32 %v116, %v129
    %v137 = vmul.f32 %v123, %v134
    %vm140 = vcmask 1041409
    %v141 = vsel %vm140, %v137, %v136
    %vm143 = vcmask 254976
    %144 = vst.msk [vmem:[#allocation5] sm:$0x3] %vm143, %v141
    // Predicated region
    $region18: #{tpu_custom_call.1} parent=1 // pred_check
      _
    $region19: #{tpu_custom_call.1} parent=1 // pred_check_branch
      %146 = sbr.rel (0) target = $region21
    $region20: #{tpu_custom_call.1} parent=1 // pred_region
      %s148 = ssub.s32 32, 32
      %149 = vsyncadd [#allocation4], %s148
      %s151 = sshll.u32 [#allocation5], 4
      %s152 = int_to_ptr.vmem [resolvable:$true] %s151
      %154 = dma.vmem_to_hbm [thread:$0]  %s152, 32, %s3, [#allocation4]
    $region21: #{tpu_custom_call.1} parent=1 // pred_fallthru
      _
    // Predicated region
    $region22: #{tpu_custom_call.1} parent=1 // pred_check
      _
    $region23: #{tpu_custom_call.1} parent=1 // pred_check_branch
      %156 = sbr.rel (0) target = $region25
    $region24: #{tpu_custom_call.1} parent=1 // pred_region
      %157 = dma.done [#allocation4], 32
    $region25: #{tpu_custom_call.1} parent=1 // pred_fallthru
      _
    %158 = vsyncpa [#allocation3], 1
    %159 = vsyncpa [#allocation4], 1

</llo_original>
